<compile_context>
chip_gen: v7x
topology: tpu7x:2x2x1
jax: 0.10.0
libtpu: 0.0.40
codegen_flags: <defaults>
</compile_context>

<pallas_src>
import jax
import jax.numpy as jnp
from jax.experimental import pallas as pl
from jax.experimental.pallas import tpu as pltpu

_LANE = 128
_SUBLANE = 8


def _round_up(x, m):
    return ((x + m - 1) // m) * m


def _make_qmlp_kernel(n_layers):
    """MLP over one (TB, Din) batch tile; all weights/biases VMEM-resident."""

    def kernel(x_ref, *refs):
        o_ref = refs[-1]
        prefs = refs[:-1]  # (w0, b0, w1, b1, ..., wL, bL)

        h = x_ref[...]  # (TB, Din) bf16  (pre-packed concat(s, a))
        for i in range(n_layers):
            w = prefs[2 * i][...]
            b = prefs[2 * i + 1][...]
            h = jnp.dot(h.astype(w.dtype), w, preferred_element_type=jnp.float32) + b
            if i < n_layers - 1:
                h = jnp.maximum(h, 0.0)  # ReLU on hidden layers, not the output
        # h: (TB, 128) f32, final layer zero-padded to 128 lanes; only column 0
        # is the Q value. Transpose on the (otherwise idle) XLU and store a
        # lane-dense packed (1, TB) row instead of a 128x-amplified (TB, 128).
        o_ref[...] = h.T[:1, :]

    return kernel


def _choose_batch_tile(B, tile_b):
    """Pick (TB, B_pad): 256-aligned tiles, >=2 grid steps when B > 256."""
    if B <= 256:
        TB = max(_SUBLANE, _round_up(B, _SUBLANE))  # single full-array tile
        return TB, TB
    half = _round_up(_round_up(B, 256) // 2, 256)
    TB = _round_up(min(tile_b, max(256, half)), 256)
    B_pad = _round_up(B, TB)
    return TB, B_pad


def qmlp_forward(s, a, params, *, tile_b=256):
    """QMLP.forward: Q = MLP(concat(flatten(s,1), flatten(a,1))) -> (B, 1)."""
    B = s.shape[0]
    # Pre-pack concat(s, a) once wrapper-side (tiny (B, Ds+Da) array) so the
    # kernel does ONE layer-0 dot; cast to bf16 BEFORE padding.
    x = jnp.concatenate([s.reshape(B, -1), a.reshape(B, -1)], axis=-1)
    x = x.astype(jnp.bfloat16)
    Din = x.shape[1]

    layers = list(params)
    n_layers = len(layers)
    assert n_layers >= 2, "QMLP needs at least first layer + final Linear(width, 1)"
    assert layers[0][0].shape[0] == Din, (layers[0][0].shape, Din)

    # Final layer (width, 1): pad to 128 output lanes so the last matmul and the
    # in-kernel transpose stay tile-shaped (padded lanes are never stored).
    w_last, b_last = layers[-1]
    out_dim = w_last.shape[1]
    assert out_dim == 1, "QMLP output dim must be 1"
    w_last_p = jnp.zeros((w_last.shape[0], _LANE), w_last.dtype).at[:, :out_dim].set(w_last)
    b_last_p = jnp.zeros((_LANE,), b_last.dtype).at[:out_dim].set(b_last)
    layers[-1] = (w_last_p, b_last_p)

    # ---- batch tiling ---------------------------------------------------------
    TB, B_pad = _choose_batch_tile(B, tile_b)
    if B_pad != B:
        x = jnp.pad(x, ((0, B_pad - B), (0, 0)))
    grid = (B_pad // TB,)

    # ---- bf16 weights (MXU-native), f32 2-D biases ----------------------------
    flat_params = []
    for w, b in layers:
        flat_params.append(w.astype(jnp.bfloat16))
        flat_params.append(b.reshape(1, -1).astype(jnp.float32))

    # ---- explicit VMEM budget -------------------------------------------------
    resident_bytes = sum(int(p.size) * p.dtype.itemsize for p in flat_params)
    max_w = max(int(w.shape[1]) for w, _ in layers)
    vmem_needed = (
        resident_bytes                        # weights/biases, single-buffered
        + 2 * TB * Din * 2                    # x tile, double-buffered bf16
        + 2 * TB * 4                          # packed (1, TB) f32 output, double-buffered
        + 6 * TB * max(max_w, _LANE) * 4      # activation intermediates headroom
    )
    vmem_limit = int(min(max(vmem_needed + (2 << 20), 32 << 20), 128 << 20))
    # TODO(synk): if resident_bytes approaches v7x's 64 MiB VMEM (>~48 MiB of
    # weights), stream the hidden-layer weights with pltpu.emit_pipeline (or tile
    # the width axis on a second grid dim) instead of keeping all layers resident.

    # ---- specs ----------------------------------------------------------------
    x_spec = pl.BlockSpec((TB, Din), lambda i: (i, 0))
    # Resident blocks never change -> single buffer (halves weight VMEM).
    resident_spec = lambda arr: pl.BlockSpec(
        arr.shape, lambda i: (0, 0), pipeline_mode=pl.Buffered(buffer_count=1))
    in_specs = [x_spec] + [resident_spec(p) for p in flat_params]
    # Packed lane-dense output: grid step i stores Q values for rows [i*TB, (i+1)*TB).
    out_specs = pl.BlockSpec((1, TB), lambda i: (0, i))
    out_shape = jax.ShapeDtypeStruct((1, B_pad), jnp.float32)

    # ---- advisory cost estimate (unpadded layer shapes) -----------------------
    flops = 2 * B_pad * sum(int(w.shape[0]) * int(w.shape[1]) for w, _ in params)
    bytes_accessed = (
        int(x.size) * 2
        + sum(int(p.size) * p.dtype.itemsize for p in flat_params)
        + B_pad * 4
    )
    cost = pl.CostEstimate(flops=flops, transcendentals=0, bytes_accessed=bytes_accessed)

    kernel = _make_qmlp_kernel(n_layers)
    out = pl.pallas_call(
        kernel,
        out_shape=out_shape,
        grid=grid,
        in_specs=in_specs,
        out_specs=out_specs,
        compiler_params=pltpu.CompilerParams(
            dimension_semantics=("parallel",),
            vmem_limit_bytes=vmem_limit,
        ),
        cost_estimate=cost,
    )(x, *flat_params)

    # slice off batch padding; packed row -> (B, 1)
    return out[0, :B].reshape(B, 1)


def init_qmlp_params(key, state_dim, action_dim, width, depth):
    """Deterministic init mimicking PyTorch nn.Linear default U(-1/sqrt(fan_in), .)."""
    in_dim = state_dim + action_dim
    dims = [in_dim] + [width] * depth + [1]
    params = []
    for i in range(len(dims) - 1):
        key, kw, kb = jax.random.split(key, 3)
        bound = 1.0 / jnp.sqrt(jnp.float32(dims[i]))
        w = jax.random.uniform(kw, (dims[i], dims[i + 1]), jnp.float32, -bound, bound)
        b = jax.random.uniform(kb, (dims[i + 1],), jnp.float32, -bound, bound)
        params.append((w, b))
    return params


def qmlp_reference(s, a, params, *, operand_dtype=jnp.float32):
    """Pure-JAX reference (optionally with bf16 operands to mirror the kernel)."""
    B = s.shape[0]
    h = jnp.concatenate([s.reshape(B, -1), a.reshape(B, -1)], axis=-1)
    n = len(params)
    for i, (w, b) in enumerate(params):
        h = jnp.dot(h.astype(operand_dtype), w.astype(operand_dtype),
                    preferred_element_type=jnp.float32) + b
        if i < n - 1:
            h = jnp.maximum(h, 0.0)
    return h


if __name__ == "__main__":
    batch = 8
    state_dim = 12
    action_dim = 4
    width = 32
    depth = 2

    key = jax.random.PRNGKey(0)
    k_s, k_a, k_p = jax.random.split(key, 3)

    s = jax.random.normal(k_s, (batch, state_dim), jnp.float32)
    a = jax.random.normal(k_a, (batch, action_dim), jnp.float32)
    params = init_qmlp_params(k_p, state_dim, action_dim, width, depth)

    out = qmlp_forward(s, a, params)
    out = jax.block_until_ready(out)
    assert out.shape == (batch, 1), out.shape

    # Match against a bf16-operand reference (tight) and the f32 reference
    # (loose, bf16 operand rounding only).
    ref_bf16 = qmlp_reference(s, a, params, operand_dtype=jnp.bfloat16)
    ref_f32 = qmlp_reference(s, a, params, operand_dtype=jnp.float32)
    assert jnp.allclose(out, ref_bf16, atol=1e-2, rtol=1e-2), (out, ref_bf16)
    assert jnp.allclose(out, ref_f32, atol=5e-2, rtol=5e-2), (out, ref_f32)

    print("KERNEL_OK")
</pallas_src>

<mosaic_0001>
module attributes {stable_mosaic.version = 11 : i64} {
  func.func @kernel(%arg0: i32, %arg1: memref<8x16xbf16, #tpu.memory_space<vmem>>, %arg2: memref<16x32xbf16, #tpu.memory_space<vmem>>, %arg3: memref<1x32xf32, #tpu.memory_space<vmem>>, %arg4: memref<32x32xbf16, #tpu.memory_space<vmem>>, %arg5: memref<1x32xf32, #tpu.memory_space<vmem>>, %arg6: memref<32x128xbf16, #tpu.memory_space<vmem>>, %arg7: memref<1x128xf32, #tpu.memory_space<vmem>>, %arg8: memref<1x8xf32, #tpu.memory_space<vmem>>) attributes {dimension_semantics = [#tpu.dimension_semantics<parallel>], iteration_bounds = array<i64: 1>, scalar_prefetch = 0 : i64, scratch_operands = 0 : i64, tpu.core_type = #tpu.core_type<tc>, window_params = [{transform_indices = @transform_0, window_bounds = array<i64: 8, 16>}, {pipeline_mode = #tpu.pipeline_mode<synchronous>, transform_indices = @transform_1, window_bounds = array<i64: 16, 32>}, {pipeline_mode = #tpu.pipeline_mode<synchronous>, transform_indices = @transform_2, window_bounds = array<i64: 1, 32>}, {pipeline_mode = #tpu.pipeline_mode<synchronous>, transform_indices = @transform_3, window_bounds = array<i64: 32, 32>}, {pipeline_mode = #tpu.pipeline_mode<synchronous>, transform_indices = @transform_4, window_bounds = array<i64: 1, 32>}, {pipeline_mode = #tpu.pipeline_mode<synchronous>, transform_indices = @transform_5, window_bounds = array<i64: 32, 128>}, {pipeline_mode = #tpu.pipeline_mode<synchronous>, transform_indices = @transform_6, window_bounds = array<i64: 1, 128>}, {transform_indices = @transform_7, window_bounds = array<i64: 1, 8>}]} {
    %c0 = arith.constant 0 : index
    %c0_0 = arith.constant 0 : index
    %0 = vector.load %arg1[%c0, %c0_0] : memref<8x16xbf16, #tpu.memory_space<vmem>>, vector<8x16xbf16>
    %c0_1 = arith.constant 0 : index
    %c0_2 = arith.constant 0 : index
    %1 = vector.load %arg2[%c0_1, %c0_2] : memref<16x32xbf16, #tpu.memory_space<vmem>>, vector<16x32xbf16>
    %c0_3 = arith.constant 0 : index
    %c0_4 = arith.constant 0 : index
    %2 = vector.load %arg3[%c0_3, %c0_4] : memref<1x32xf32, #tpu.memory_space<vmem>>, vector<1x32xf32>
    %cst = arith.constant dense<0.000000e+00> : vector<8x32xf32>
    %3 = tpu.matmul %0, %1, %cst {dimension_numbers = #tpu.dot_dimension_numbers<[1], [0], [0], [1], [0, 0, 1, 1], [], []>} : vector<8x16xbf16>, vector<16x32xbf16>, vector<8x32xf32> -> vector<8x32xf32>
    %4 = vector.broadcast %2 : vector<1x32xf32> to vector<8x32xf32>
    %5 = arith.addf %3, %4 : vector<8x32xf32>
    %cst_5 = arith.constant 0.000000e+00 : f32
    %6 = vector.broadcast %cst_5 : f32 to vector<8x32xf32>
    %7 = arith.maximumf %5, %6 : vector<8x32xf32>
    %c0_6 = arith.constant 0 : index
    %c0_7 = arith.constant 0 : index
    %8 = vector.load %arg4[%c0_6, %c0_7] : memref<32x32xbf16, #tpu.memory_space<vmem>>, vector<32x32xbf16>
    %c0_8 = arith.constant 0 : index
    %c0_9 = arith.constant 0 : index
    %9 = vector.load %arg5[%c0_8, %c0_9] : memref<1x32xf32, #tpu.memory_space<vmem>>, vector<1x32xf32>
    %10 = arith.truncf %7 : vector<8x32xf32> to vector<8x32xbf16>
    %cst_10 = arith.constant dense<0.000000e+00> : vector<8x32xf32>
    %11 = tpu.matmul %10, %8, %cst_10 {dimension_numbers = #tpu.dot_dimension_numbers<[1], [0], [0], [1], [0, 0, 1, 1], [], []>} : vector<8x32xbf16>, vector<32x32xbf16>, vector<8x32xf32> -> vector<8x32xf32>
    %12 = vector.broadcast %9 : vector<1x32xf32> to vector<8x32xf32>
    %13 = arith.addf %11, %12 : vector<8x32xf32>
    %cst_11 = arith.constant 0.000000e+00 : f32
    %14 = vector.broadcast %cst_11 : f32 to vector<8x32xf32>
    %15 = arith.maximumf %13, %14 : vector<8x32xf32>
    %c0_12 = arith.constant 0 : index
    %c0_13 = arith.constant 0 : index
    %16 = vector.load %arg6[%c0_12, %c0_13] : memref<32x128xbf16, #tpu.memory_space<vmem>>, vector<32x128xbf16>
    %c0_14 = arith.constant 0 : index
    %c0_15 = arith.constant 0 : index
    %17 = vector.load %arg7[%c0_14, %c0_15] : memref<1x128xf32, #tpu.memory_space<vmem>>, vector<1x128xf32>
    %18 = arith.truncf %15 : vector<8x32xf32> to vector<8x32xbf16>
    %cst_16 = arith.constant dense<0.000000e+00> : vector<8x128xf32>
    %19 = tpu.matmul %18, %16, %cst_16 {dimension_numbers = #tpu.dot_dimension_numbers<[1], [0], [0], [1], [0, 0, 1, 1], [], []>} : vector<8x32xbf16>, vector<32x128xbf16>, vector<8x128xf32> -> vector<8x128xf32>
    %20 = vector.broadcast %17 : vector<1x128xf32> to vector<8x128xf32>
    %21 = arith.addf %19, %20 : vector<8x128xf32>
    %22 = tpu.transpose %21, [1, 0] : vector<8x128xf32> -> vector<128x8xf32>
    %23 = vector.extract_strided_slice %22 {offsets = [0, 0], sizes = [1, 8], strides = [1, 1]} : vector<128x8xf32> to vector<1x8xf32>
    %c0_17 = arith.constant 0 : index
    %c0_18 = arith.constant 0 : index
    %24 = vector.load %arg8[%c0_17, %c0_18] : memref<1x8xf32, #tpu.memory_space<vmem>>, vector<1x8xf32>
    tpu.vector_store %arg8[%c0_17, %c0_18], %23 {strides = array<i32>} : memref<1x8xf32, #tpu.memory_space<vmem>>, vector<1x8xf32>,
    return
  }
  func.func @transform_0(%arg0: i32) -> (i32, i32) {
    %c0_i32 = arith.constant 0 : i32
    %c0_i32_0 = arith.constant 0 : i32
    return %arg0, %c0_i32 : i32, i32
  }
  func.func @transform_1(%arg0: i32) -> (i32, i32) {
    %c0_i32 = arith.constant 0 : i32
    %c0_i32_0 = arith.constant 0 : i32
    %c0_i32_1 = arith.constant 0 : i32
    return %c0_i32, %c0_i32_0 : i32, i32
  }
  func.func @transform_2(%arg0: i32) -> (i32, i32) {
    %c0_i32 = arith.constant 0 : i32
    %c0_i32_0 = arith.constant 0 : i32
    %c0_i32_1 = arith.constant 0 : i32
    return %c0_i32, %c0_i32_0 : i32, i32
  }
  func.func @transform_3(%arg0: i32) -> (i32, i32) {
    %c0_i32 = arith.constant 0 : i32
    %c0_i32_0 = arith.constant 0 : i32
    %c0_i32_1 = arith.constant 0 : i32
    return %c0_i32, %c0_i32_0 : i32, i32
  }
  func.func @transform_4(%arg0: i32) -> (i32, i32) {
    %c0_i32 = arith.constant 0 : i32
    %c0_i32_0 = arith.constant 0 : i32
    %c0_i32_1 = arith.constant 0 : i32
    return %c0_i32, %c0_i32_0 : i32, i32
  }
  func.func @transform_5(%arg0: i32) -> (i32, i32) {
    %c0_i32 = arith.constant 0 : i32
    %c0_i32_0 = arith.constant 0 : i32
    %c0_i32_1 = arith.constant 0 : i32
    return %c0_i32, %c0_i32_0 : i32, i32
  }
  func.func @transform_6(%arg0: i32) -> (i32, i32) {
    %c0_i32 = arith.constant 0 : i32
    %c0_i32_0 = arith.constant 0 : i32
    %c0_i32_1 = arith.constant 0 : i32
    return %c0_i32, %c0_i32_0 : i32, i32
  }
  func.func @transform_7(%arg0: i32) -> (i32, i32) {
    %c0_i32 = arith.constant 0 : i32
    %c0_i32_0 = arith.constant 0 : i32
    return %c0_i32, %arg0 : i32, i32
  }
}

</mosaic_0001>

<llo_original>
// kernel: tpu_custom_call.1
$region0: #{tpu_custom_call.1}
  #allocation0 [shape = 'u32[]', space=smem, size = 0x4, offset = 0x4, fixed_abs, tag = 'smem constant byte address 0x4 - core index']
  #allocation1 [shape = 'u32[144,128]{1,0:T(1,128)}', space=vmem, size = 0x12000, scoped, tag = 'internal scratch']
  %s0 = inlined_call_operand.hbm [shape: bf16[8,16], index: 0, kind: input, shape index: {}]
  %s1 = inlined_call_operand.hbm [shape: bf16[16,32], index: 1, kind: input, shape index: {}]
  %s2 = inlined_call_operand.vmem [shape: f32[1,32], index: 2, kind: input, shape index: {}]
  %s3 = inlined_call_operand.hbm [shape: bf16[32,32], index: 3, kind: input, shape index: {}]
  %s4 = inlined_call_operand.vmem [shape: f32[1,32], index: 4, kind: input, shape index: {}]
  %s5 = inlined_call_operand.vmem [shape: bf16[32,128], index: 5, kind: input, shape index: {}]
  %s6 = inlined_call_operand.vmem [shape: f32[1,128], index: 6, kind: input, shape index: {}]
  %s7 = inlined_call_operand.hbm [shape: f32[1,8], index: 7, kind: output, shape index: {}]
  %s8 = sld [smem:[#allocation0]]
  $region50: #{tpu_custom_call.1} parent=0
    _
  %s10 = ssub.s32 1, %s8
  %s11 = scalar_select 0, %s10, %s8
  $region1: #{tpu_custom_call.1} parent=0
    #allocation2 [shape = 'u8[2048]{0}', space=vmem, size = 0x800, scoped, tag = 'input window, operand 0, single buffered']
    #allocation3 [shape = 's32[1]{0}', space=sflag, size = 0x4, scoped, tag = 'scoped memory for tpu_custom_call.1']
    #allocation4 [shape = 's32[1]{0}', space=sflag, size = 0x4, scoped, tag = 'scoped memory for tpu_custom_call.1']
    #allocation5 [shape = 'u8[4096]{0}', space=vmem, size = 0x1000, scoped, tag = 'input window, operand 1, single buffered']
    #allocation6 [shape = 's32[1]{0}', space=sflag, size = 0x4, scoped, tag = 'scoped memory for tpu_custom_call.1']
    #allocation7 [shape = 'u8[8192]{0}', space=vmem, size = 0x2000, scoped, tag = 'input window, operand 3, single buffered']
    #allocation8 [shape = 'u8[512]{0}', space=vmem, size = 0x400, scoped, tag = 'output window, operand 0, single buffered']
    %12 = vsyncpa [#allocation3], 0
    %13 = vsyncpa [#allocation6], 0
    %14 = vsyncpa [#allocation4], 0
    // Predicated region
    $region2: #{tpu_custom_call.1} parent=1 // pred_check
      _
    $region3: #{tpu_custom_call.1} parent=1 // pred_check_branch
      %16 = sbr.rel (0) target = $region5
    $region4: #{tpu_custom_call.1} parent=1 // pred_region
      %s18 = ssub.s32 64, 64
      %19 = vsyncadd [#allocation3], %s18
      %s21 = sshll.u32 [#allocation2], 4
      %s22 = int_to_ptr.vmem [resolvable:$true] %s21
      %24 = dma.hbm_to_vmem [thread:$0]  %s0, 64, %s22, [#allocation3]
    $region5: #{tpu_custom_call.1} parent=1 // pred_fallthru
      _
    // Predicated region
    $region6: #{tpu_custom_call.1} parent=1 // pred_check
      _
    $region7: #{tpu_custom_call.1} parent=1 // pred_check_branch
      %26 = sbr.rel (0) target = $region9
    $region8: #{tpu_custom_call.1} parent=1 // pred_region
      %s28 = ssub.s32 128, 128
      %29 = vsyncadd [#allocation6], %s28
      %s30 = sshll.u32 [#allocation5], 4
      %s31 = int_to_ptr.vmem [resolvable:$true] %s30
      %36 = dma.hbm_to_vmem [thread:$0]  %s1, 128, %s31, [#allocation6], 64, 64, 4
    $region9: #{tpu_custom_call.1} parent=1 // pred_fallthru
      _
    // Predicated region
    $region10: #{tpu_custom_call.1} parent=1 // pred_check
      _
    $region11: #{tpu_custom_call.1} parent=1 // pred_check_branch
      %38 = sbr.rel (0) target = $region13
    $region12: #{tpu_custom_call.1} parent=1 // pred_region
      _
    $region13: #{tpu_custom_call.1} parent=1 // pred_fallthru
      _
    // Predicated region
    $region14: #{tpu_custom_call.1} parent=1 // pred_check
      _
    $region15: #{tpu_custom_call.1} parent=1 // pred_check_branch
      %40 = sbr.rel (0) target = $region17
    $region16: #{tpu_custom_call.1} parent=1 // pred_region
      %s42 = ssub.s32 256, 256
      %43 = vsyncadd [#allocation6], %s42
      %s44 = sshll.u32 [#allocation7], 4
      %s45 = int_to_ptr.vmem [resolvable:$true] %s44
      %50 = dma.hbm_to_vmem [thread:$0]  %s3, 256, %s45, [#allocation6], 64, 64, 4
    $region17: #{tpu_custom_call.1} parent=1 // pred_fallthru
      _
    // Predicated region
    $region18: #{tpu_custom_call.1} parent=1 // pred_check
      _
    $region19: #{tpu_custom_call.1} parent=1 // pred_check_branch
      %52 = sbr.rel (0) target = $region21
    $region20: #{tpu_custom_call.1} parent=1 // pred_region
      _
    $region21: #{tpu_custom_call.1} parent=1 // pred_fallthru
      _
    // Predicated region
    $region22: #{tpu_custom_call.1} parent=1 // pred_check
      _
    $region23: #{tpu_custom_call.1} parent=1 // pred_check_branch
      %54 = sbr.rel (0) target = $region25
    $region24: #{tpu_custom_call.1} parent=1 // pred_region
      _
    $region25: #{tpu_custom_call.1} parent=1 // pred_fallthru
      _
    // Predicated region
    $region26: #{tpu_custom_call.1} parent=1 // pred_check
      _
    $region27: #{tpu_custom_call.1} parent=1 // pred_check_branch
      %56 = sbr.rel (0) target = $region29
    $region28: #{tpu_custom_call.1} parent=1 // pred_region
      _
    $region29: #{tpu_custom_call.1} parent=1 // pred_fallthru
      _
    // Predicated region
    $region30: #{tpu_custom_call.1} parent=1 // pred_check
      _
    $region31: #{tpu_custom_call.1} parent=1 // pred_check_branch
      %58 = sbr.rel (0) target = $region33
    $region32: #{tpu_custom_call.1} parent=1 // pred_region
      %59 = dma.done [#allocation3], 64
    $region33: #{tpu_custom_call.1} parent=1 // pred_fallthru
      _
    // Predicated region
    $region34: #{tpu_custom_call.1} parent=1 // pred_check
      _
    $region35: #{tpu_custom_call.1} parent=1 // pred_check_branch
      %61 = sbr.rel (0) target = $region37
    $region36: #{tpu_custom_call.1} parent=1 // pred_region
      %62 = dma.done [#allocation6], 128
    $region37: #{tpu_custom_call.1} parent=1 // pred_fallthru
      _
    // Predicated region
    $region38: #{tpu_custom_call.1} parent=1 // pred_check
      _
    $region39: #{tpu_custom_call.1} parent=1 // pred_check_branch
      %64 = sbr.rel (0) target = $region41
    $region40: #{tpu_custom_call.1} parent=1 // pred_region
      %65 = dma.done [#allocation6], 256
    $region41: #{tpu_custom_call.1} parent=1 // pred_fallthru
      _
    %v67 = vld [vmem:[#allocation2] sm:$0xf]
    %v68 = vld [vmem:[#allocation5] sm:$0xf]
    %v69 = vld [vmem:[#allocation5 + $0x4] sm:$0xf]
    %v70 = vld [vmem:[%s2] sm:$0x1]
    %v72 = vlaneseq
    %v73 = vshrl.u32 %v72, 7
    %v74 = vsub.s32 0, %v73
    %v75 = vrot.slane %v70, %v74
    %v79 = vunpack.c.l.b16 %v68
    %v80 = vunpack.c.l.b16 %v69
    %v81 = vpack.c.b16 %v80, %v79
    %vm83 = vcmask 130048
    %v85 = vsel %vm83, %v67, 0
    %87 = vmatprep.subr.bf16.mxu0 0
    %88 = vmatpush1.bf16.msra.mxu0 %v81
    %89 = vmatprep.subr.bf16.mxu0 0
    %90 = vmatpush1.bf16.msra.mxu0 0
    %91 = vmatprep.subr.bf16.mxu0 0
    %92 = vmatpush1.bf16.msra.mxu0 0
    %93 = vmatprep.subr.bf16.mxu0 0
    %94 = vmatpush1.bf16.msra.mxu0 0
    %95 = vmatprep.subr.bf16.mxu0 0
    %96 = vmatpush1.bf16.msra.mxu0 0
    %97 = vmatprep.subr.bf16.mxu0 0
    %98 = vmatpush1.bf16.msra.mxu0 0
    %99 = vmatprep.subr.bf16.mxu0 0
    %100 = vmatpush1.bf16.msra.mxu0 0
    %101 = vmatprep.subr.bf16.mxu0 0
    %102 = vmatpush1.bf16.msra.mxu0 0
    %103 = vmatprep.subr.bf16.mxu0 0
    %104 = vmatpush1.bf16.msra.mxu0 0
    %105 = vmatprep.subr.bf16.mxu0 0
    %106 = vmatpush1.bf16.msra.mxu0 0
    %107 = vmatprep.subr.bf16.mxu0 0
    %108 = vmatpush1.bf16.msra.mxu0 0
    %109 = vmatprep.subr.bf16.mxu0 0
    %110 = vmatpush1.bf16.msra.mxu0 0
    %111 = vmatprep.subr.bf16.mxu0 0
    %112 = vmatpush1.bf16.msra.mxu0 0
    %113 = vmatprep.subr.bf16.mxu0 0
    %114 = vmatpush1.bf16.msra.mxu0 0
    %115 = vmatprep.subr.bf16.mxu0 0
    %116 = vmatpush1.bf16.msra.mxu0 0
    %117 = vmatprep.subr.bf16.mxu0 0
    %118 = vmatpush1.bf16.msra.mxu0 0
    %119 = vmatprep.mubr.bf16.mxu0 0
    %120 = vmatmul.mubr.bf16.gmra.mrb[0].mxu0 %v85
    %v121 = vpop.f32.mrb[0].mxu0
    %v122 = vadd.f32 %v75, %v121
    %v123 = vpop.f32.mrb[0].mxu0
    %v124 = vpop.f32.mrb[0].mxu0
    %v125 = vpop.f32.mrb[0].mxu0
    %126 = vdwg.mxu0
    %v127 = vmax.f32 %v122, 0.0
    %v128 = vld [vmem:[#allocation7] sm:$0xf]
    %v129 = vld [vmem:[#allocation7 + $0x4] sm:$0xf]
    %v130 = vld [vmem:[#allocation7 + $0x8] sm:$0xf]
    %v131 = vld [vmem:[#allocation7 + $0xc] sm:$0xf]
    %v132 = vld [vmem:[%s4] sm:$0x1]
    %v133 = vpack.c.bf16 %v127, %v127
    %v135 = vlaneseq
    %v136 = vshrl.u32 %v135, 7
    %v137 = vsub.s32 0, %v136
    %v138 = vrot.slane %v132, %v137
    %v144 = vunpack.c.l.b16 %v128
    %v145 = vunpack.c.l.b16 %v129
    %v146 = vunpack.c.l.b16 %v130
    %v147 = vunpack.c.l.b16 %v131
    %v148 = vpack.c.b16 %v145, %v144
    %v149 = vpack.c.b16 %v147, %v146
    %vm152 = vcmask 261120
    %v154 = vsel %vm152, %v133, 0
    %156 = vmatprep.subr.bf16.mxu0 0
    %157 = vmatpush1.bf16.msra.mxu0 %v148
    %158 = vmatprep.subr.bf16.mxu0 0
    %159 = vmatpush1.bf16.msra.mxu0 %v149
    %160 = vmatprep.subr.bf16.mxu0 0
    %161 = vmatpush1.bf16.msra.mxu0 0
    %162 = vmatprep.subr.bf16.mxu0 0
    %163 = vmatpush1.bf16.msra.mxu0 0
    %164 = vmatprep.subr.bf16.mxu0 0
    %165 = vmatpush1.bf16.msra.mxu0 0
    %166 = vmatprep.subr.bf16.mxu0 0
    %167 = vmatpush1.bf16.msra.mxu0 0
    %168 = vmatprep.subr.bf16.mxu0 0
    %169 = vmatpush1.bf16.msra.mxu0 0
    %170 = vmatprep.subr.bf16.mxu0 0
    %171 = vmatpush1.bf16.msra.mxu0 0
    %172 = vmatprep.subr.bf16.mxu0 0
    %173 = vmatpush1.bf16.msra.mxu0 0
    %174 = vmatprep.subr.bf16.mxu0 0
    %175 = vmatpush1.bf16.msra.mxu0 0
    %176 = vmatprep.subr.bf16.mxu0 0
    %177 = vmatpush1.bf16.msra.mxu0 0
    %178 = vmatprep.subr.bf16.mxu0 0
    %179 = vmatpush1.bf16.msra.mxu0 0
    %180 = vmatprep.subr.bf16.mxu0 0
    %181 = vmatpush1.bf16.msra.mxu0 0
    %182 = vmatprep.subr.bf16.mxu0 0
    %183 = vmatpush1.bf16.msra.mxu0 0
    %184 = vmatprep.subr.bf16.mxu0 0
    %185 = vmatpush1.bf16.msra.mxu0 0
    %186 = vmatprep.subr.bf16.mxu0 0
    %187 = vmatpush1.bf16.msra.mxu0 0
    %188 = vmatprep.mubr.bf16.mxu0 0
    %189 = vmatmul.mubr.bf16.gmra.mrb[0].mxu0 %v154
    %v190 = vpop.f32.mrb[0].mxu0
    %v191 = vadd.f32 %v138, %v190
    %v192 = vpop.f32.mrb[0].mxu0
    %v193 = vpop.f32.mrb[0].mxu0
    %v194 = vpop.f32.mrb[0].mxu0
    %195 = vdwg.mxu0
    %v196 = vmax.f32 %v191, 0.0
    %v197 = vld [vmem:[%s5] sm:$0xf]
    %v198 = vld [vmem:[%s5 + $0x4] sm:$0xf]
    %v199 = vld [vmem:[%s5 + $0x8] sm:$0xf]
    %v200 = vld [vmem:[%s5 + $0xc] sm:$0xf]
    %v201 = vld [vmem:[%s6] sm:$0x1]
    %v202 = vpack.c.bf16 %v196, %v196
    %v204 = vlaneseq
    %v205 = vshrl.u32 %v204, 7
    %v206 = vsub.s32 0, %v205
    %v207 = vrot.slane %v201, %v206
    %v213 = vunpack.c.l.b16 %v197
    %v214 = vunpack.c.l.b16 %v198
    %v215 = vunpack.c.l.b16 %v199
    %v216 = vunpack.c.l.b16 %v200
    %v217 = vpack.c.b16 %v214, %v213
    %v218 = vpack.c.b16 %v216, %v215
    %v222 = vsel %vm152, %v202, 0
    %224 = vmatprep.subr.bf16.mxu0 0
    %225 = vmatpush1.bf16.msra.mxu0 %v217
    %226 = vmatprep.subr.bf16.mxu0 0
    %227 = vmatpush1.bf16.msra.mxu0 %v218
    %228 = vmatprep.subr.bf16.mxu0 0
    %229 = vmatpush1.bf16.msra.mxu0 0
    %230 = vmatprep.subr.bf16.mxu0 0
    %231 = vmatpush1.bf16.msra.mxu0 0
    %232 = vmatprep.subr.bf16.mxu0 0
    %233 = vmatpush1.bf16.msra.mxu0 0
    %234 = vmatprep.subr.bf16.mxu0 0
    %235 = vmatpush1.bf16.msra.mxu0 0
    %236 = vmatprep.subr.bf16.mxu0 0
    %237 = vmatpush1.bf16.msra.mxu0 0
    %238 = vmatprep.subr.bf16.mxu0 0
    %239 = vmatpush1.bf16.msra.mxu0 0
    %240 = vmatprep.subr.bf16.mxu0 0
    %241 = vmatpush1.bf16.msra.mxu0 0
    %242 = vmatprep.subr.bf16.mxu0 0
    %243 = vmatpush1.bf16.msra.mxu0 0
    %244 = vmatprep.subr.bf16.mxu0 0
    %245 = vmatpush1.bf16.msra.mxu0 0
    %246 = vmatprep.subr.bf16.mxu0 0
    %247 = vmatpush1.bf16.msra.mxu0 0
    %248 = vmatprep.subr.bf16.mxu0 0
    %249 = vmatpush1.bf16.msra.mxu0 0
    %250 = vmatprep.subr.bf16.mxu0 0
    %251 = vmatpush1.bf16.msra.mxu0 0
    %252 = vmatprep.subr.bf16.mxu0 0
    %253 = vmatpush1.bf16.msra.mxu0 0
    %254 = vmatprep.subr.bf16.mxu0 0
    %255 = vmatpush1.bf16.msra.mxu0 0
    %256 = vmatprep.mubr.bf16.mxu0 0
    %257 = vmatmul.mubr.bf16.gmra.mrb[0].mxu0 %v222
    %v258 = vpop.f32.mrb[0].mxu0
    %v259 = vadd.f32 %v207, %v258
    %v260 = vpop.f32.mrb[0].mxu0
    %v261 = vpop.f32.mrb[0].mxu0
    %v262 = vpop.f32.mrb[0].mxu0
    %263 = vdwg.mxu0
    %264 = vxpose.xlu0.b32.start [1/16] %v259, 128
    %265 = vxpose.xlu0.b32.cont [2/16] 0.0, 128
    %266 = vxpose.xlu0.b32.cont [3/16] 0.0, 128
    %267 = vxpose.xlu0.b32.cont [4/16] 0.0, 128
    %268 = vxpose.xlu0.b32.cont [5/16] 0.0, 128
    %269 = vxpose.xlu0.b32.cont [6/16] 0.0, 128
    %270 = vxpose.xlu0.b32.cont [7/16] 0.0, 128
    %271 = vxpose.xlu0.b32.cont [8/16] 0.0, 128
    %272 = vxpose.xlu0.b32.cont [9/16] 0.0, 128
    %273 = vxpose.xlu0.b32.cont [10/16] 0.0, 128
    %274 = vxpose.xlu0.b32.cont [11/16] 0.0, 128
    %275 = vxpose.xlu0.b32.cont [12/16] 0.0, 128
    %276 = vxpose.xlu0.b32.cont [13/16] 0.0, 128
    %277 = vxpose.xlu0.b32.cont [14/16] 0.0, 128
    %278 = vxpose.xlu0.b32.cont [15/16] 0.0, 128
    %279 = vxpose.xlu0.b32.end [16/16] 0.0, 128
    %v280 = vpop.trf.xlu0
    %v281 = vpop.trf.xlu0
    %v282 = vpop.trf.xlu0
    %v283 = vpop.trf.xlu0
    %v284 = vpop.trf.xlu0
    %v285 = vpop.trf.xlu0
    %v286 = vpop.trf.xlu0
    %v287 = vpop.trf.xlu0
    %v288 = vpop.trf.xlu0
    %v289 = vpop.trf.xlu0
    %v290 = vpop.trf.xlu0
    %v291 = vpop.trf.xlu0
    %v292 = vpop.trf.xlu0
    %v293 = vpop.trf.xlu0
    %v294 = vpop.trf.xlu0
    %v295 = vpop.trf.xlu0
    %vm296 = vcmask 57344
    %297 = vst.msk [vmem:[#allocation8] sm:$0x1] %vm296, %v280
    // Predicated region
    $region42: #{tpu_custom_call.1} parent=1 // pred_check
      _
    $region43: #{tpu_custom_call.1} parent=1 // pred_check_branch
      %299 = sbr.rel (0) target = $region45
    $region44: #{tpu_custom_call.1} parent=1 // pred_region
      %s301 = ssub.s32 16, 16
      %302 = vsyncadd [#allocation4], %s301
      %s304 = sshll.u32 [#allocation8], 4
      %s305 = int_to_ptr.vmem [resolvable:$true] %s304
      %307 = dma.vmem_to_hbm [thread:$0]  %s305, 16, %s7, [#allocation4]
    $region45: #{tpu_custom_call.1} parent=1 // pred_fallthru
      _
    // Predicated region
    $region46: #{tpu_custom_call.1} parent=1 // pred_check
      _
    $region47: #{tpu_custom_call.1} parent=1 // pred_check_branch
      %309 = sbr.rel (0) target = $region49
    $region48: #{tpu_custom_call.1} parent=1 // pred_region
      %310 = dma.done [#allocation4], 16
    $region49: #{tpu_custom_call.1} parent=1 // pred_fallthru
      _
    %311 = vsyncpa [#allocation3], 1
    %312 = vsyncpa [#allocation6], 1
    %313 = vsyncpa [#allocation4], 1

</llo_original>
